<compile_context>
chip_gen: v5e
topology: v5e:2x2
jax: 0.10.0
libtpu: 0.0.40
codegen_flags: <defaults>
</compile_context>

<pallas_src>
import math

import jax
import jax.numpy as jnp
from jax.experimental import pallas as pl
from jax.experimental.pallas import tpu as pltpu

_LANE = 128        # TPU lane width (last dim must be lane-dense)
_SUBLANE = 8       # f32 sublane width
_MXU_ALIGN = 256   # v6e/v7x MXU is 2x256^2: 256-wide tiles keep it fully busy
_INV_SQRT2 = 1.0 / math.sqrt(2.0)


def _round_up(x, m):
    return (x + m - 1) // m * m


def _vmem_capacity_bytes():
    """Per-core VMEM capacity (128 MiB on v5e/v6e, 64 MiB/TC on v7x).
    Hardware query only; falls back to the most conservative value."""
    try:
        cap = int(pltpu.get_tpu_info().vmem_capacity_bytes)
        if cap > 0:
            return cap
    except Exception:  # safe fallback for versions without get_tpu_info
        pass
    return 64 * 1024 * 1024


def _gelu_exact(h):
    # Exact erf-based GELU == PyTorch F.gelu default.
    return 0.5 * h * (1.0 + jax.lax.erf(h * jnp.float32(_INV_SQRT2)))


# ----------------------------------------------------------------------------
# Kernels
# ----------------------------------------------------------------------------
def _ffn_kernel_fused(x_ref, w1t_ref, b1_ref, w2t_ref, b2_ref, o_ref):
    """Whole hidden dim resident: lin1 -> GELU -> lin2 in one pass, no scratch."""
    h = jnp.dot(x_ref[...], w1t_ref[...], preferred_element_type=jnp.float32)
    h = _gelu_exact(h + b1_ref[...])
    out = jnp.dot(h.astype(w2t_ref.dtype), w2t_ref[...],
                  preferred_element_type=jnp.float32)
    o_ref[...] = (out + b2_ref[...]).astype(o_ref.dtype)


def _ffn_kernel_chunked_inplace(x_ref, w1t_ref, b1_ref, w2t_ref, b2_ref, o_ref):
    """H chunked, f32 output: accumulate straight into the resident output
    block (its block index is constant along the hidden axis) -- no scratch."""
    hi = pl.program_id(1)

    @pl.when(hi == 0)
    def _():
        o_ref[...] = jnp.broadcast_to(b2_ref[...], o_ref.shape)

    h = jnp.dot(x_ref[...], w1t_ref[...], preferred_element_type=jnp.float32)
    h = _gelu_exact(h + b1_ref[...])
    o_ref[...] += jnp.dot(h.astype(w2t_ref.dtype), w2t_ref[...],
                          preferred_element_type=jnp.float32)


def _ffn_kernel_chunked_scratch(x_ref, w1t_ref, b1_ref, w2t_ref, b2_ref, o_ref,
                                acc_ref):
    """H chunked, non-f32 output: f32 partial sums live in a VMEM scratch."""
    hi = pl.program_id(1)

    @pl.when(hi == 0)
    def _():
        acc_ref[...] = jnp.zeros_like(acc_ref)

    h = jnp.dot(x_ref[...], w1t_ref[...], preferred_element_type=jnp.float32)
    h = _gelu_exact(h + b1_ref[...])
    acc_ref[...] += jnp.dot(h.astype(w2t_ref.dtype), w2t_ref[...],
                            preferred_element_type=jnp.float32)

    @pl.when(hi == pl.num_programs(1) - 1)
    def _():
        o_ref[...] = (acc_ref[...] + b2_ref[...]).astype(o_ref.dtype)


# ----------------------------------------------------------------------------
# Parameter prep (call once at init, NOT per forward call)
# ----------------------------------------------------------------------------
def prepare_ffn_params(w1, b1, w2, b2, *, weight_dtype=jnp.bfloat16,
                       hidden_align=_MXU_ALIGN):
    """PyTorch Linear layout: w1 [H, D], b1 [H], w2 [D, H], b2 [D].

    - Transpose to GEMM layout; zero-pad D to a lane multiple (128) and H to a
      256 multiple when that wastes <= 25% (full v6e/v7x MXU width), else 128.
      Zero padding is exact: padded hidden units have bias 0 -> GELU(0) = 0 and
      zero W2^T rows; padded embed columns are sliced off after the kernel.
    - Weights are cast to bf16 by default (MXU-native rate, half the HBM/VMEM
      footprint); biases stay f32 and are added to the f32 accumulator.
    """
    H, D = w1.shape
    Dp = _round_up(D, _LANE)
    Hp = _round_up(H, max(hidden_align, _LANE))
    if Hp - H > max(H // 4, 0):          # too much waste -> lane-align only
        Hp = _round_up(H, _LANE)
    w1t = jnp.pad(jnp.transpose(w1), ((0, Dp - D), (0, Hp - H))).astype(weight_dtype)
    w2t = jnp.pad(jnp.transpose(w2), ((0, Hp - H), (0, Dp - D))).astype(weight_dtype)
    b1p = jnp.pad(b1, (0, Hp - H)).reshape(1, Hp).astype(jnp.float32)
    b2p = jnp.pad(b2, (0, Dp - D)).reshape(1, Dp).astype(jnp.float32)
    return {"w1t": w1t, "b1": b1p, "w2t": w2t, "b2": b2p,
            "embed_dim": D, "hidden_dim": H}


def _largest_divisor_tile(total, align, fits):
    """Largest t with t % align == 0, t | total and fits(t); fallback = align."""
    q = total // align
    for d in range(q, 0, -1):
        if q % d == 0 and fits(d * align):
            return d * align
    return align


# ----------------------------------------------------------------------------
# Forward pass
# ----------------------------------------------------------------------------
def position_feedforward_prepared(x, params, *, tile_m=None, tile_h=None):
    """x: [B, S, D]; params from prepare_ffn_params()."""
    B, S, D = x.shape
    assert D == params["embed_dim"]
    w1t, b1p, w2t, b2p = params["w1t"], params["b1"], params["w2t"], params["b2"]
    Dp, Hp = w1t.shape

    x_bytes = jnp.dtype(x.dtype).itemsize
    w_bytes = jnp.dtype(w1t.dtype).itemsize
    out_dtype = x.dtype

    cap = _vmem_capacity_bytes()          # generation-aware (128 MiB v5e/v6e, 64 MiB v7x)
    budget = int(0.80 * cap)              # headroom for Mosaic internal scratch

    # ---- token tiling -------------------------------------------------------
    M = B * S
    if tile_m is None:
        # Large tiles amortize weight streaming; cap so x/out (+ worst-case f32
        # accumulator) tiles use at most ~half the budget.
        tile_m = 512
        while tile_m > _SUBLANE and (
                4 * tile_m * Dp * x_bytes + tile_m * Dp * 4) > budget // 2:
            tile_m //= 2
        tile_m = max(_SUBLANE,
                     _round_up(min(tile_m, _round_up(M, _SUBLANE)), _SUBLANE))
        # Megacore (v7x has 2 TCs): keep >= 2 token tiles whenever M allows so
        # the "parallel" grid axis can shard across both cores.
        while _round_up(M, tile_m) // tile_m < 2 and tile_m > _SUBLANE:
            tile_m = _round_up(tile_m // 2, _SUBLANE)
    else:
        tile_m = max(_SUBLANE,
                     _round_up(min(tile_m, _round_up(M, _SUBLANE)), _SUBLANE))
    Mp = _round_up(M, tile_m)

    # ---- hidden tiling ------------------------------------------------------
    h_align = _MXU_ALIGN if Hp % _MXU_ALIGN == 0 else _LANE

    def footprint(th, w_bufs):
        wt = w_bufs * 2 * Dp * th * w_bytes           # W1^T + W2^T tiles
        bias = w_bufs * (th + Dp) * 4                 # f32 biases
        io = 2 * 2 * tile_m * Dp * x_bytes            # x + out, double-buffered
        hidden = tile_m * th * 4                      # f32 lin1 intermediate
        acc = 0 if th == Hp else tile_m * Dp * 4      # f32 accumulator (chunked)
        return wt + bias + io + hidden + acc

    # ---- input prep (skip pad when already aligned) -------------------------
    x2d = x.reshape(M, D)
    if Mp != M or Dp != D:
        x2d = jnp.pad(x2d, ((0, Mp - M), (0, Dp - D)))

    def run(mode, th):
        assert Hp % th == 0, "tile_h must divide the padded hidden dim"
        grid_h = Hp // th
        grid = (Mp // tile_m, grid_h)

        w_bufs = 1 if mode == "fused_sb" else 2
        need = footprint(th, w_bufs)
        # Never set the scoped limit below the real buffer requirement; by
        # construction need <= 0.8 * cap so 1.2 * need stays within capacity.
        vmem_limit = int(min(cap, max(1.2 * need, need, 32 * 1024 * 1024)))

        w_stream = 1 if grid_h == 1 else grid[0]      # chunked: weights re-stream
        cost = pl.CostEstimate(
            flops=4 * Mp * Dp * Hp,
            transcendentals=Mp * Hp,
            bytes_accessed=int(2 * Mp * Dp * x_bytes
                               + w_stream * 2 * Dp * Hp * w_bytes
                               + (Dp + Hp) * 4))

        if grid_h == 1:
            kernel, scratch = _ffn_kernel_fused, []
        elif out_dtype == jnp.float32:
            kernel, scratch = _ffn_kernel_chunked_inplace, []
        else:
            kernel, scratch = _ffn_kernel_chunked_scratch, [
                pltpu.VMEM((tile_m, Dp), jnp.float32)]

        wkw = {}
        if mode == "fused_sb":
            # Weight block indices never change: single-buffer them.
            wkw = {"pipeline_mode": pl.Buffered(buffer_count=1)}

        in_specs = [
            pl.BlockSpec((tile_m, Dp), lambda i, h: (i, 0)),           # x tile
            pl.BlockSpec((Dp, th), lambda i, h: (0, h), **wkw),        # W1^T
            pl.BlockSpec((1, th), lambda i, h: (0, h), **wkw),         # b1
            pl.BlockSpec((th, Dp), lambda i, h: (h, 0), **wkw),        # W2^T
            pl.BlockSpec((1, Dp), lambda i, h: (0, 0), **wkw),         # b2
        ]
        out_spec = pl.BlockSpec((tile_m, Dp), lambda i, h: (i, 0))

        return pl.pallas_call(
            kernel,
            out_shape=jax.ShapeDtypeStruct((Mp, Dp), out_dtype),
            grid_spec=pltpu.PrefetchScalarGridSpec(
                num_scalar_prefetch=0,
                grid=grid,
                in_specs=in_specs,
                out_specs=out_spec,
                scratch_shapes=scratch),
            compiler_params=pltpu.CompilerParams(
                dimension_semantics=("parallel", "arbitrary"),
                vmem_limit_bytes=vmem_limit),
            cost_estimate=cost,
        )(x2d, w1t, b1p, w2t, b2p)

    # ---- mode selection ------------------------------------------------------
    if tile_h is not None:
        assert Hp % tile_h == 0, "tile_h must divide the padded hidden dim"
        out2d = run("fused" if tile_h == Hp else "chunked", tile_h)
    elif footprint(Hp, 2) <= budget:
        out2d = run("fused", Hp)                       # fully resident, no scratch
    elif hasattr(pl, "Buffered") and footprint(Hp, 1) <= budget:
        try:
            out2d = run("fused_sb", Hp)                # resident, single-buffered
        except (TypeError, ValueError, NotImplementedError,
                pltpu.LoweringException):
            th = _largest_divisor_tile(
                Hp, h_align, lambda t: footprint(t, 2) <= budget)
            out2d = run("chunked", th)
    else:
        # TODO(synk): add a third grid axis over the output D dimension when
        # even the minimum hidden chunk overflows VMEM (huge embed dims on v7x).
        th = _largest_divisor_tile(
            Hp, h_align, lambda t: footprint(t, 2) <= budget)
        out2d = run("chunked", th)

    if Mp != M or Dp != D:
        out2d = out2d[:M, :D]
    return out2d.reshape(B, S, D)


def position_feedforward(x, w1, b1, w2, b2, *, tile_m=None):
    """Convenience wrapper. Prefer prepare_ffn_params() once at init plus
    position_feedforward_prepared() per step (this wrapper re-pays the
    transpose / pad / cast on every call)."""
    return position_feedforward_prepared(
        x, prepare_ffn_params(w1, b1, w2, b2), tile_m=tile_m)


def _reference(x, w1, b1, w2, b2):
    h = jnp.einsum("bsd,hd->bsh", x, w1) + b1
    h = 0.5 * h * (1.0 + jax.lax.erf(h / jnp.sqrt(jnp.float32(2.0))))
    return jnp.einsum("bsh,dh->bsd", h, w2) + b2


if __name__ == "__main__":
    # Small shapes: batch=2, seq=8, embed_dim=32, num_parameters(hidden)=64
    B, S, D, H = 2, 8, 32, 64

    key = jax.random.PRNGKey(0)
    kx, kw1, kb1, kw2, kb2 = jax.random.split(key, 5)

    x = jax.random.normal(kx, (B, S, D), dtype=jnp.float32)

    # Deterministic init mimicking nn.Linear: U(-1/sqrt(fan_in), 1/sqrt(fan_in))
    bound1 = 1.0 / math.sqrt(D)
    w1 = jax.random.uniform(kw1, (H, D), jnp.float32, -bound1, bound1)
    b1 = jax.random.uniform(kb1, (H,), jnp.float32, -bound1, bound1)
    bound2 = 1.0 / math.sqrt(H)
    w2 = jax.random.uniform(kw2, (D, H), jnp.float32, -bound2, bound2)
    b2 = jax.random.uniform(kb2, (D,), jnp.float32, -bound2, bound2)

    ref = _reference(x, w1, b1, w2, b2)

    # 1) f32 weights, fused path (H resident): tight check vs reference.
    p_f32 = prepare_ffn_params(w1, b1, w2, b2, weight_dtype=jnp.float32)
    out = jax.block_until_ready(position_feedforward_prepared(x, p_f32))
    assert out.shape == (B, S, D)
    assert jnp.allclose(out, ref, atol=1e-4, rtol=1e-4), "f32 fused mismatch"

    # 2) default bf16 weights (MXU-native), fused path: loose check.
    p_bf16 = prepare_ffn_params(w1, b1, w2, b2)
    out_bf = jax.block_until_ready(position_feedforward_prepared(x, p_bf16))
    assert jnp.allclose(out_bf, ref, atol=3e-2, rtol=3e-2), "bf16 fused mismatch"

    # 3) force chunked hidden axis to exercise the accumulation kernels.
    H2 = 256
    kw3, kb3, kw4, kb4 = jax.random.split(kw2, 4)
    w1b = jax.random.uniform(kw3, (H2, D), jnp.float32, -bound1, bound1)
    b1b = jax.random.uniform(kb3, (H2,), jnp.float32, -bound1, bound1)
    bound2b = 1.0 / math.sqrt(H2)
    w2b = jax.random.uniform(kw4, (D, H2), jnp.float32, -bound2b, bound2b)
    b2b = jax.random.uniform(kb4, (D,), jnp.float32, -bound2b, bound2b)
    ref2 = _reference(x, w1b, b1b, w2b, b2b)

    p2_f32 = prepare_ffn_params(w1b, b1b, w2b, b2b, weight_dtype=jnp.float32)
    out2 = jax.block_until_ready(
        position_feedforward_prepared(x, p2_f32, tile_h=128))  # in-place f32 acc
    assert jnp.allclose(out2, ref2, atol=1e-4, rtol=1e-4), "chunked f32 mismatch"

    p2_bf16 = prepare_ffn_params(w1b, b1b, w2b, b2b)
    out3 = jax.block_until_ready(position_feedforward_prepared(
        x.astype(jnp.bfloat16), p2_bf16, tile_h=128))           # scratch acc path
    assert out3.dtype == jnp.bfloat16
    assert jnp.allclose(out3.astype(jnp.float32), ref2, atol=1e-1, rtol=1e-1), \
        "chunked bf16 mismatch"

    print("KERNEL_OK")
</pallas_src>

<mosaic_0001>
module attributes {stable_mosaic.version = 11 : i64} {
  func.func @_ffn_kernel_fused(%arg0: i32, %arg1: i32, %arg2: memref<8x128xf32, #tpu.memory_space<vmem>>, %arg3: memref<128x128xf32, #tpu.memory_space<vmem>>, %arg4: memref<1x128xf32, #tpu.memory_space<vmem>>, %arg5: memref<128x128xf32, #tpu.memory_space<vmem>>, %arg6: memref<1x128xf32, #tpu.memory_space<vmem>>, %arg7: memref<8x128xf32, #tpu.memory_space<vmem>>) attributes {dimension_semantics = [#tpu.dimension_semantics<parallel>, #tpu.dimension_semantics<arbitrary>], iteration_bounds = array<i64: 2, 1>, scalar_prefetch = 0 : i64, scratch_operands = 0 : i64, tpu.core_type = #tpu.core_type<tc>, window_params = [{transform_indices = @transform_0, window_bounds = array<i64: 8, 128>}, {transform_indices = @transform_1, window_bounds = array<i64: 128, 128>}, {transform_indices = @transform_2, window_bounds = array<i64: 1, 128>}, {transform_indices = @transform_3, window_bounds = array<i64: 128, 128>}, {pipeline_mode = #tpu.pipeline_mode<synchronous>, transform_indices = @transform_4, window_bounds = array<i64: 1, 128>}, {transform_indices = @transform_5, window_bounds = array<i64: 8, 128>}]} {
    %c0 = arith.constant 0 : index
    %c0_0 = arith.constant 0 : index
    %0 = vector.load %arg2[%c0, %c0_0] : memref<8x128xf32, #tpu.memory_space<vmem>>, vector<8x128xf32>
    %c0_1 = arith.constant 0 : index
    %c0_2 = arith.constant 0 : index
    %1 = vector.load %arg3[%c0_1, %c0_2] : memref<128x128xf32, #tpu.memory_space<vmem>>, vector<128x128xf32>
    %cst = arith.constant dense<0.000000e+00> : vector<8x128xf32>
    %2 = tpu.matmul %0, %1, %cst {dimension_numbers = #tpu.dot_dimension_numbers<[1], [0], [0], [1], [0, 0, 1, 1], [], []>} : vector<8x128xf32>, vector<128x128xf32>, vector<8x128xf32> -> vector<8x128xf32>
    %c0_3 = arith.constant 0 : index
    %c0_4 = arith.constant 0 : index
    %3 = vector.load %arg4[%c0_3, %c0_4] : memref<1x128xf32, #tpu.memory_space<vmem>>, vector<1x128xf32>
    %4 = vector.broadcast %3 : vector<1x128xf32> to vector<8x128xf32>
    %5 = arith.addf %2, %4 : vector<8x128xf32>
    %cst_5 = arith.constant 5.000000e-01 : f32
    %6 = vector.broadcast %cst_5 : f32 to vector<8x128xf32>
    %7 = arith.mulf %6, %5 : vector<8x128xf32>
    %cst_6 = arith.constant 0.707106769 : f32
    %8 = vector.broadcast %cst_6 : f32 to vector<8x128xf32>
    %9 = arith.mulf %5, %8 : vector<8x128xf32>
    %10 = math.erf %9 : vector<8x128xf32>
    %cst_7 = arith.constant 1.000000e+00 : f32
    %11 = vector.broadcast %cst_7 : f32 to vector<8x128xf32>
    %12 = arith.addf %11, %10 : vector<8x128xf32>
    %13 = arith.mulf %7, %12 : vector<8x128xf32>
    %c0_8 = arith.constant 0 : index
    %c0_9 = arith.constant 0 : index
    %14 = vector.load %arg5[%c0_8, %c0_9] : memref<128x128xf32, #tpu.memory_space<vmem>>, vector<128x128xf32>
    %cst_10 = arith.constant dense<0.000000e+00> : vector<8x128xf32>
    %15 = tpu.matmul %13, %14, %cst_10 {dimension_numbers = #tpu.dot_dimension_numbers<[1], [0], [0], [1], [0, 0, 1, 1], [], []>} : vector<8x128xf32>, vector<128x128xf32>, vector<8x128xf32> -> vector<8x128xf32>
    %c0_11 = arith.constant 0 : index
    %c0_12 = arith.constant 0 : index
    %16 = vector.load %arg6[%c0_11, %c0_12] : memref<1x128xf32, #tpu.memory_space<vmem>>, vector<1x128xf32>
    %17 = vector.broadcast %16 : vector<1x128xf32> to vector<8x128xf32>
    %18 = arith.addf %15, %17 : vector<8x128xf32>
    %c0_13 = arith.constant 0 : index
    %c0_14 = arith.constant 0 : index
    %19 = vector.load %arg7[%c0_13, %c0_14] : memref<8x128xf32, #tpu.memory_space<vmem>>, vector<8x128xf32>
    tpu.vector_store %arg7[%c0_13, %c0_14], %18 {strides = array<i32>} : memref<8x128xf32, #tpu.memory_space<vmem>>, vector<8x128xf32>,
    return
  }
  func.func @transform_0(%arg0: i32, %arg1: i32) -> (i32, i32) {
    %c0_i32 = arith.constant 0 : i32
    %c0_i32_0 = arith.constant 0 : i32
    return %arg0, %c0_i32 : i32, i32
  }
  func.func @transform_1(%arg0: i32, %arg1: i32) -> (i32, i32) {
    %c0_i32 = arith.constant 0 : i32
    %c0_i32_0 = arith.constant 0 : i32
    return %c0_i32, %arg1 : i32, i32
  }
  func.func @transform_2(%arg0: i32, %arg1: i32) -> (i32, i32) {
    %c0_i32 = arith.constant 0 : i32
    %c0_i32_0 = arith.constant 0 : i32
    return %c0_i32, %arg1 : i32, i32
  }
  func.func @transform_3(%arg0: i32, %arg1: i32) -> (i32, i32) {
    %c0_i32 = arith.constant 0 : i32
    %c0_i32_0 = arith.constant 0 : i32
    return %arg1, %c0_i32 : i32, i32
  }
  func.func @transform_4(%arg0: i32, %arg1: i32) -> (i32, i32) {
    %c0_i32 = arith.constant 0 : i32
    %c0_i32_0 = arith.constant 0 : i32
    %c0_i32_1 = arith.constant 0 : i32
    return %c0_i32, %c0_i32_0 : i32, i32
  }
  func.func @transform_5(%arg0: i32, %arg1: i32) -> (i32, i32) {
    %c0_i32 = arith.constant 0 : i32
    %c0_i32_0 = arith.constant 0 : i32
    return %arg0, %c0_i32 : i32, i32
  }
}

</mosaic_0001>

<llo_original>
// kernel: tpu_custom_call.1
$region0: #{tpu_custom_call.1}
  #allocation0 [shape = 'u32[]', space=smem, size = 0x4, offset = 0x4, fixed_abs, tag = 'smem constant byte address 0x4 - core index']
  #allocation1 [shape = 'u32[72,128]{1,0:T(1,128)}', space=vmem, size = 0x9000, scoped, tag = 'internal scratch']
  %s0 = inlined_call_operand.hbm [shape: f32[16,128], index: 0, kind: input, shape index: {}]
  %s1 = inlined_call_operand.hbm [shape: f32[128,128], index: 1, kind: input, shape index: {}]
  %s2 = inlined_call_operand.vmem [shape: f32[1,128], index: 2, kind: input, shape index: {}]
  %s3 = inlined_call_operand.hbm [shape: f32[128,128], index: 3, kind: input, shape index: {}]
  %s4 = inlined_call_operand.vmem [shape: f32[1,128], index: 4, kind: input, shape index: {}]
  %s5 = inlined_call_operand.hbm [shape: f32[16,128], index: 5, kind: output, shape index: {}]
  %s6 = sld [smem:[#allocation0]]
  $region65: #{tpu_custom_call.1} parent=0
    _
  %s8 = ssub.s32 1, %s6
  %s9 = scalar_select 0, %s8, %s6
  $region1: #{tpu_custom_call.1} parent=0
    #allocation2 [shape = 'u8[8192]{0}', space=vmem, size = 0x2000, scoped, tag = 'input window, operand 0']
    #allocation3 [shape = 's32[2]{0}', space=sflag, size = 0x8, scoped, tag = 'scoped memory for tpu_custom_call.1']
    #allocation4 [shape = 's32[2]{0}', space=sflag, size = 0x8, scoped, tag = 'scoped memory for tpu_custom_call.1']
    #allocation5 [shape = 'u8[65536]{0}', space=vmem, size = 0x10000, scoped, tag = 'input window, operand 1, single buffered']
    #allocation6 [shape = 's32[1]{0}', space=sflag, size = 0x4, scoped, tag = 'scoped memory for tpu_custom_call.1']
    #allocation7 [shape = 'u8[65536]{0}', space=vmem, size = 0x10000, scoped, tag = 'input window, operand 3, single buffered']
    #allocation8 [shape = 'u8[8192]{0}', space=vmem, size = 0x2000, scoped, tag = 'output window, operand 0']
    %10 = vsyncpa [#allocation3], 0
    %s11 = scalar_lea.sflag [#allocation3], 1
    %12 = vsyncpa %s11, 0
    %13 = vsyncpa [#allocation6], 0
    %14 = vsyncpa [#allocation4], 0
    %s15 = scalar_lea.sflag [#allocation4], 1
    %16 = vsyncpa %s15, 0
    loop: start=0, step=1, limit=4
    $region2: #{tpu_custom_call.1} parent=1 // loop_pre_header
      _
    $region3: #{tpu_custom_call.1} parent=1 // loop_header
      %s18 = sphi 0, %s22
      %p19 = scmp.ge.s32.totalorder %s18, 4
      %s25 = sphi 0, %s37
      %s26 = sphi 0, %s33
      %s27 = sphi 0, %s25
      %s28 = sphi 0, %s26
      %s29 = sphi 0, %s27
      %s30 = sphi 0, %s28
      %s40 = sphi 0, %s42
      %s43 = sphi 0, %s40
      %s44 = sphi 0, %s43
      %s60 = sphi 0, %s44
      %s66 = sphi 0, %s68
      %s69 = sphi 0, %s66
      %s70 = sphi 0, %s69
      %s86 = sphi 0, %s70
      %s92 = sphi 0, %s94
      %s95 = sphi 0, %s92
      %s96 = sphi 0, %s95
      %s112 = sphi 0, %s96
      %s118 = sphi 0, %s120
      %s121 = sphi 0, %s118
      %s122 = sphi 0, %s121
      %s138 = sphi 0, %s122
      %s142 = sphi 0, %s142
      %s144 = sphi 0, %s142
      %s145 = sphi 0, %s144
      %s159 = sphi 0, %s145
      %s165 = sphi 0, %s167
      %s168 = sphi 0, %s165
      %s169 = sphi 0, %s168
      %s185 = sphi 0, %s169
    $region4: #{tpu_custom_call.1} parent=1 // loop_header_branch
      %21 = sbr.rel (%p19) target = $region8
    $region5: #{tpu_custom_call.1} parent=1 // loop_body
      %s23 = ssub.s32 %s18, 1
      %s24 = ssub.s32 %s18, 2
      %s31 = sadd.s32 1, %s26
      %p32 = scmp.ge.s32.totalorder %s31, 1
      %s33 = scalar_select %p32, 0, %s31
      %s34 = sadd.s32 1, %s25
      %s35 = scalar_select %p32, %s34, %s25
      %p36 = scmp.ge.s32.totalorder %s35, 2
      %s37 = scalar_select %p36, 0, %s35
      %s38 = ssub.s32 %s25, %s37
      %p39 = scmp.eq.s32.totalorder %s38, 0
      %s41 = sadd.s32 %s40, 1
      %s42 = scalar_select %p39, %s40, %s41
      %p45 = pneg %p39
      %p46 = scmp.eq.s32.totalorder %s18, 1
      %p47 = por %p45, %p46
      %p48 = scmp.ne.s32.totalorder %s40, %s43
      %p49 = scmp.eq.s32.totalorder %s18, 0
      %p50 = por %p48, %p49
      %p51 = scmp.ne.s32.totalorder %s40, %s43
      %p52 = scmp.eq.s32.totalorder %s23, 1
      %p53 = por %p51, %p52
      %p54 = scmp.ne.s32.totalorder %s43, %s44
      %p55 = scmp.eq.s32.totalorder %s23, 0
      %p56 = por %p54, %p55
      %p57 = scmp.ne.s32.totalorder %s43, %s44
      %p58 = scmp.eq.s32.totalorder %s24, 1
      %p59 = por %p57, %p58
      %p61 = scmp.ne.s32.totalorder %s44, %s60
      %p62 = scmp.eq.s32.totalorder %s24, 0
      %p63 = por %p61, %p62
      %s64 = ssub.s32 %s26, %s33
      %p65 = scmp.eq.s32.totalorder %s64, 0
      %s67 = sadd.s32 %s66, 1
      %s68 = scalar_select %p65, %s66, %s67
      %p71 = pneg %p65
      %p72 = scmp.eq.s32.totalorder %s18, 1
      %p73 = por %p71, %p72
      %p74 = scmp.ne.s32.totalorder %s66, %s69
      %p75 = scmp.eq.s32.totalorder %s18, 0
      %p76 = por %p74, %p75
      %p77 = scmp.ne.s32.totalorder %s66, %s69
      %p78 = scmp.eq.s32.totalorder %s23, 1
      %p79 = por %p77, %p78
      %p80 = scmp.ne.s32.totalorder %s69, %s70
      %p81 = scmp.eq.s32.totalorder %s23, 0
      %p82 = por %p80, %p81
      %p83 = scmp.ne.s32.totalorder %s69, %s70
      %p84 = scmp.eq.s32.totalorder %s24, 1
      %p85 = por %p83, %p84
      %p87 = scmp.ne.s32.totalorder %s70, %s86
      %p88 = scmp.eq.s32.totalorder %s24, 0
      %p89 = por %p87, %p88
      %s90 = ssub.s32 %s26, %s33
      %p91 = scmp.eq.s32.totalorder %s90, 0
      %s93 = sadd.s32 %s92, 1
      %s94 = scalar_select %p91, %s92, %s93
      %p97 = pneg %p91
      %p98 = scmp.eq.s32.totalorder %s18, 1
      %p99 = por %p97, %p98
      %p100 = scmp.ne.s32.totalorder %s92, %s95
      %p101 = scmp.eq.s32.totalorder %s18, 0
      %p102 = por %p100, %p101
      %p103 = scmp.ne.s32.totalorder %s92, %s95
      %p104 = scmp.eq.s32.totalorder %s23, 1
      %p105 = por %p103, %p104
      %p106 = scmp.ne.s32.totalorder %s95, %s96
      %p107 = scmp.eq.s32.totalorder %s23, 0
      %p108 = por %p106, %p107
      %p109 = scmp.ne.s32.totalorder %s95, %s96
      %p110 = scmp.eq.s32.totalorder %s24, 1
      %p111 = por %p109, %p110
      %p113 = scmp.ne.s32.totalorder %s96, %s112
      %p114 = scmp.eq.s32.totalorder %s24, 0
      %p115 = por %p113, %p114
      %s116 = ssub.s32 %s26, %s33
      %p117 = scmp.eq.s32.totalorder %s116, 0
      %s119 = sadd.s32 %s118, 1
      %s120 = scalar_select %p117, %s118, %s119
      %p123 = pneg %p117
      %p124 = scmp.eq.s32.totalorder %s18, 1
      %p125 = por %p123, %p124
      %p126 = scmp.ne.s32.totalorder %s118, %s121
      %p127 = scmp.eq.s32.totalorder %s18, 0
      %p128 = por %p126, %p127
      %p129 = scmp.ne.s32.totalorder %s118, %s121
      %p130 = scmp.eq.s32.totalorder %s23, 1
      %p131 = por %p129, %p130
      %p132 = scmp.ne.s32.totalorder %s121, %s122
      %p133 = scmp.eq.s32.totalorder %s23, 0
      %p134 = por %p132, %p133
      %p135 = scmp.ne.s32.totalorder %s121, %s122
      %p136 = scmp.eq.s32.totalorder %s24, 1
      %p137 = por %p135, %p136
      %p139 = scmp.ne.s32.totalorder %s122, %s138
      %p140 = scmp.eq.s32.totalorder %s24, 0
      %p141 = por %p139, %p140
      %s143 = sadd.s32 %s142, 1
      %p146 = scmp.eq.s32.totalorder %s18, 1
      %p147 = scmp.ne.s32.totalorder %s142, %s144
      %p148 = scmp.eq.s32.totalorder %s18, 0
      %p149 = por %p147, %p148
      %p150 = scmp.ne.s32.totalorder %s142, %s144
      %p151 = scmp.eq.s32.totalorder %s23, 1
      %p152 = por %p150, %p151
      %p153 = scmp.ne.s32.totalorder %s144, %s145
      %p154 = scmp.eq.s32.totalorder %s23, 0
      %p155 = por %p153, %p154
      %p156 = scmp.ne.s32.totalorder %s144, %s145
      %p157 = scmp.eq.s32.totalorder %s24, 1
      %p158 = por %p156, %p157
      %p160 = scmp.ne.s32.totalorder %s145, %s159
      %p161 = scmp.eq.s32.totalorder %s24, 0
      %p162 = por %p160, %p161
      %s163 = ssub.s32 %s25, %s37
      %p164 = scmp.eq.s32.totalorder %s163, 0
      %s166 = sadd.s32 %s165, 1
      %s167 = scalar_select %p164, %s165, %s166
      %p170 = pneg %p164
      %p171 = scmp.eq.s32.totalorder %s18, 1
      %p172 = por %p170, %p171
      %p173 = scmp.ne.s32.totalorder %s165, %s168
      %p174 = scmp.eq.s32.totalorder %s18, 0
      %p175 = por %p173, %p174
      %p176 = scmp.ne.s32.totalorder %s165, %s168
      %p177 = scmp.eq.s32.totalorder %s23, 1
      %p178 = por %p176, %p177
      %p179 = scmp.ne.s32.totalorder %s168, %s169
      %p180 = scmp.eq.s32.totalorder %s23, 0
      %p181 = por %p179, %p180
      %p182 = scmp.ne.s32.totalorder %s168, %s169
      %p183 = scmp.eq.s32.totalorder %s24, 1
      %p184 = por %p182, %p183
      %p186 = scmp.ne.s32.totalorder %s169, %s185
      %p187 = scmp.eq.s32.totalorder %s24, 0
      %p188 = por %p186, %p187
      %p189 = scmp.le.s32.totalorder 1, %s18
      %p190 = scmp.lt.s32.totalorder %s18, 3
      %p191 = pnand %p189, %p190
      %p192 = pneg %p191
      // Predicated region
      $region9: #{tpu_custom_call.1} parent=5 // pred_check
        _
      $region10: #{tpu_custom_call.1} parent=5 // pred_check_branch
        %194 = sbr.rel (%p191) target = $region12
      $region11: #{tpu_custom_call.1} parent=5 // pred_region
        %s195 = ssub.s32 %s18, 1
        // Predicated region
        $region13: #{tpu_custom_call.1} parent=11 // pred_check
          %p196 = pneg %p82
        $region14: #{tpu_custom_call.1} parent=11 // pred_check_branch
          %198 = sbr.rel (%p196) target = $region16
        $region15: #{tpu_custom_call.1} parent=11 // pred_region
          %200 = vsyncadd [#allocation6], 0
          %s201 = smul.addr %s28, 8
          %s202 = scalar_lea.hbm %s1, %s201
          %s203 = sshll.u32 %s202, 4
          %s204 = int_to_ptr.hbm [resolvable:$true] %s203
          %s205 = sshll.u32 [#allocation5], 4
          %s206 = int_to_ptr.vmem [resolvable:$true] %s205
          %211 = dma.hbm_to_vmem [thread:$0]  %s204, 2048, %s206, [#allocation6], 128, 128, 8
        $region16: #{tpu_custom_call.1} parent=11 // pred_fallthru
          _
        // Predicated region
        $region17: #{tpu_custom_call.1} parent=11 // pred_check
          %p212 = pneg %p108
        $region18: #{tpu_custom_call.1} parent=11 // pred_check_branch
          %214 = sbr.rel (%p212) target = $region20
        $region19: #{tpu_custom_call.1} parent=11 // pred_region
          %p215 = scmp.lt.s32.totalorder %s28, 0
          %s216 = scalar_select %p215, %s28, 0
          %s217 = scalar_lea.vmem %s2, %s216
        $region20: #{tpu_custom_call.1} parent=11 // pred_fallthru
          _
        // Predicated region
        $region21: #{tpu_custom_call.1} parent=11 // pred_check
          %p218 = pneg %p134
        $region22: #{tpu_custom_call.1} parent=11 // pred_check_branch
          %220 = sbr.rel (%p218) target = $region24
        $region23: #{tpu_custom_call.1} parent=11 // pred_region
          %s221 = smul.u32 16, %s28
          %223 = vsyncadd [#allocation6], 0
          %s224 = smul.addr %s221, 8
          %s225 = scalar_lea.hbm %s3, %s224
          %s226 = sshll.u32 %s225, 4
          %s227 = int_to_ptr.hbm [resolvable:$true] %s226
          %s228 = sshll.u32 [#allocation7], 4
          %s229 = int_to_ptr.vmem [resolvable:$true] %s228
          %234 = dma.hbm_to_vmem [thread:$0]  %s227, 2048, %s229, [#allocation6], 128, 128, 8
        $region24: #{tpu_custom_call.1} parent=11 // pred_fallthru
          _
        // Predicated region
        $region25: #{tpu_custom_call.1} parent=11 // pred_check
          %p235 = pneg %p155
        $region26: #{tpu_custom_call.1} parent=11 // pred_check_branch
          %237 = sbr.rel (%p235) target = $region28
        $region27: #{tpu_custom_call.1} parent=11 // pred_region
          _
        $region28: #{tpu_custom_call.1} parent=11 // pred_fallthru
          _
      $region12: #{tpu_custom_call.1} parent=5 // pred_fallthru
        _
      %p238 = scmp.lt.s32.totalorder %s18, 2
      // Predicated region
      $region29: #{tpu_custom_call.1} parent=5 // pred_check
        %p239 = pneg %p238
      $region30: #{tpu_custom_call.1} parent=5 // pred_check_branch
        %241 = sbr.rel (%p239) target = $region32
      $region31: #{tpu_custom_call.1} parent=5 // pred_region
        // Predicated region
        $region33: #{tpu_custom_call.1} parent=31 // pred_check
          %p242 = pneg %p50
        $region34: #{tpu_custom_call.1} parent=31 // pred_check_branch
          %244 = sbr.rel (%p242) target = $region36
        $region35: #{tpu_custom_call.1} parent=31 // pred_region
          %s245 = sand.u32 %s40, 1
          %s246 = scalar_lea.sflag [#allocation3], %s245
          %s247 = sand.u32 %s40, 1
          %s248 = smul.addr %s247, 8
          %s249 = scalar_lea.vmem [#allocation2], %s248
          %251 = vsyncadd %s246, 0
          %s252 = smul.addr %s25, 8
          %s253 = scalar_lea.hbm %s0, %s252
          %s255 = sshll.u32 %s253, 4
          %s256 = int_to_ptr.hbm [resolvable:$true] %s255
          %s257 = sshll.u32 %s249, 4
          %s258 = int_to_ptr.vmem [resolvable:$true] %s257
          %260 = dma.hbm_to_vmem [thread:$0]  %s256, 128, %s258, %s246
        $region36: #{tpu_custom_call.1} parent=31 // pred_fallthru
          _
      $region32: #{tpu_custom_call.1} parent=5 // pred_fallthru
        _
      %p261 = scmp.le.s32.totalorder 1, %s18
      %p262 = scmp.lt.s32.totalorder %s18, 3
      %p263 = pnand %p261, %p262
      %p264 = pneg %p263
      // Predicated region
      $region37: #{tpu_custom_call.1} parent=5 // pred_check
        _
      $region38: #{tpu_custom_call.1} parent=5 // pred_check_branch
        %266 = sbr.rel (%p263) target = $region40
      $region39: #{tpu_custom_call.1} parent=5 // pred_region
        %s267 = ssub.s32 %s18, 1
        %s268 = sand.u32 %s43, 1
        %s269 = scalar_lea.sflag [#allocation3], %s268
        %s270 = sand.u32 %s43, 1
        %s271 = smul.addr %s270, 8
        %s272 = scalar_lea.vmem [#allocation2], %s271
        // Predicated region
        $region41: #{tpu_custom_call.1} parent=39 // pred_check
          %p273 = pneg %p56
        $region42: #{tpu_custom_call.1} parent=39 // pred_check_branch
          %275 = sbr.rel (%p273) target = $region44
        $region43: #{tpu_custom_call.1} parent=39 // pred_region
          %277 = dma.done %s269, 128
        $region44: #{tpu_custom_call.1} parent=39 // pred_fallthru
          _
        // Predicated region
        $region45: #{tpu_custom_call.1} parent=39 // pred_check
          %p278 = pneg %p82
        $region46: #{tpu_custom_call.1} parent=39 // pred_check_branch
          %280 = sbr.rel (%p278) target = $region48
        $region47: #{tpu_custom_call.1} parent=39 // pred_region
          %282 = dma.done [#allocation6], 2048
        $region48: #{tpu_custom_call.1} parent=39 // pred_fallthru
          _
        // Predicated region
        $region49: #{tpu_custom_call.1} parent=39 // pred_check
          %p283 = pneg %p134
        $region50: #{tpu_custom_call.1} parent=39 // pred_check_branch
          %285 = sbr.rel (%p283) target = $region52
        $region51: #{tpu_custom_call.1} parent=39 // pred_region
          %287 = dma.done [#allocation6], 2048
        $region52: #{tpu_custom_call.1} parent=39 // pred_fallthru
          _
        %s288 = sand.u32 %s43, 1
        %s289 = scalar_lea.sflag [#allocation3], %s288
        %s290 = sand.u32 %s43, 1
        %s291 = smul.addr %s290, 8
        %s292 = scalar_lea.vmem [#allocation2], %s291
        %p293 = pneg %p56
        %p294 = pneg %p53
        %p295 = pneg %p82
        %p296 = pneg %p79
        %p297 = scmp.lt.s32.totalorder %s28, 0
        %s298 = scalar_select %p297, %s28, 0
        %s299 = scalar_lea.vmem %s2, %s298
        %p300 = pneg %p108
        %p301 = pneg %p105
        %p302 = pneg %p134
        %p303 = pneg %p131
        %p304 = pneg %p155
        %p305 = pneg %p152
        %p306 = pneg %p181
        %p307 = pneg %p178
        %s308 = sand.u32 %s168, 1
        %s309 = scalar_lea.sflag [#allocation4], %s308
        %s310 = sand.u32 %s168, 1
        %s311 = smul.addr %s310, 8
        %s312 = scalar_lea.vmem [#allocation8], %s311
        %p313 = scmp.lt.s32.totalorder %s28, 0
        %s314 = scalar_select %p313, %s28, 0
        %s315 = scalar_lea.vmem %s2, %s314
        %s316 = smul.u32 16, %s28
        %v317 = vld [vmem:[%s272] sm:$0xff]
        %v318 = vld [vmem:[#allocation5] sm:$0xff]
        %v319 = vld [vmem:[#allocation5 + $0x8] sm:$0xff]
        %v320 = vld [vmem:[#allocation5 + $0x10] sm:$0xff]
        %v321 = vld [vmem:[#allocation5 + $0x18] sm:$0xff]
        %v322 = vld [vmem:[#allocation5 + $0x20] sm:$0xff]
        %v323 = vld [vmem:[#allocation5 + $0x28] sm:$0xff]
        %v324 = vld [vmem:[#allocation5 + $0x30] sm:$0xff]
        %v325 = vld [vmem:[#allocation5 + $0x38] sm:$0xff]
        %v326 = vld [vmem:[#allocation5 + $0x40] sm:$0xff]
        %v327 = vld [vmem:[#allocation5 + $0x48] sm:$0xff]
        %v328 = vld [vmem:[#allocation5 + $0x50] sm:$0xff]
        %v329 = vld [vmem:[#allocation5 + $0x58] sm:$0xff]
        %v330 = vld [vmem:[#allocation5 + $0x60] sm:$0xff]
        %v331 = vld [vmem:[#allocation5 + $0x68] sm:$0xff]
        %v332 = vld [vmem:[#allocation5 + $0x70] sm:$0xff]
        %v333 = vld [vmem:[#allocation5 + $0x78] sm:$0xff]
        %v334 = vld [vmem:[%s315] sm:$0x1]
        %v336 = vperm.slane %v334, 0
        %338 = vmatpush.msra.mxu0 %v333
        %339 = vmatpush.msra.mxu0 %v332
        %340 = vmatpush.msra.mxu0 %v331
        %341 = vmatpush.msra.mxu0 %v330
        %342 = vmatpush.msra.mxu0 %v329
        %343 = vmatpush.msra.mxu0 %v328
        %344 = vmatpush.msra.mxu0 %v327
        %345 = vmatpush.msra.mxu0 %v326
        %346 = vmatpush.msra.mxu0 %v325
        %347 = vmatpush.msra.mxu0 %v324
        %348 = vmatpush.msra.mxu0 %v323
        %349 = vmatpush.msra.mxu0 %v322
        %350 = vmatpush.msra.mxu0 %v321
        %351 = vmatpush.msra.mxu0 %v320
        %352 = vmatpush.msra.mxu0 %v319
        %353 = vmatpush.msra.mxu0 %v318
        %354 = vmatmul.f32.gmra.mxu0 %v317
        %v355 = vpop.f32.mrf.mxu0
        %v356 = vadd.f32 %v336, %v355
        %357 = vdwg.mxu0
        %v358 = vmul.f32 %v356, 0.5
        %v359 = vmul.f32 %v356, 0.70710677
        %v360 = vmul.f32 %v359, %v359
        %v361 = vmin.f32 16.0, %v360
        %v362 = vmul.f32 %v361, 2.1237322e-06
        %v363 = vadd.f32 %v362, 0.00028619796
        %v364 = vmul.f32 %v361, %v363
        %v365 = vadd.f32 %v364, 0.0036580483
        %v366 = vmul.f32 %v361, %v365
        %v367 = vadd.f32 %v366, 0.05243302
        %v368 = vmul.f32 %v361, %v367
        %v369 = vadd.f32 %v368, 0.18741608
        %v370 = vmul.f32 %v361, %v369
        %v371 = vadd.f32 %v370, 1.1283791
        %v372 = vmul.f32 %v359, %v371
        %v373 = vmul.f32 %v361, 3.8918573e-05
        %v374 = vadd.f32 %v373, 0.001143296
        %v375 = vmul.f32 %v361, %v374
        %v376 = vadd.f32 %v375, 0.014752088
        %v377 = vmul.f32 %v361, %v376
        %v378 = vadd.f32 %v377, 0.112945676
        %v379 = vmul.f32 %v361, %v378
        %v380 = vadd.f32 %v379, 0.4994258
        %v381 = vmul.f32 %v361, %v380
        %v382 = vadd.f32 %v381, 1.0
        %v383 = vrcp.pop %v382
        %v384 = vmul.f32 %v382, %v383
        %v385 = vsub.f32 1.0, %v384
        %v386 = vmul.f32 %v383, %v385
        %v387 = vadd.f32 %v383, %v386
        %vm388 = vweird.f32 %v382
        %vm389 = vweird.f32 %v383
        %vm390 = vmor %vm388, %vm389
        %v391 = vsel %vm390, %v383, %v387
        %v392 = vand.u32 2147483647, %v382
        %vm393 = vcmp.eq.f32.partialorder %v392, 8.507059e+37
        %v394 = vand.u32 %v382, 2147483648
        %v395 = vor.u32 1.1754944e-38, %v394
        %v396 = vsel %vm393, %v395, %v391
        %v397 = vmul.f32 %v372, %v396
        %v398 = vmin.f32 %v397, 1.0
        %v399 = vmax.f32 %v398, -1.0
        %v400 = vadd.f32 %v399, 1.0
        %v401 = vmul.f32 %v358, %v400
        %v402 = vld [vmem:[#allocation7] sm:$0xff]
        %v403 = vld [vmem:[#allocation7 + $0x8] sm:$0xff]
        %v404 = vld [vmem:[#allocation7 + $0x10] sm:$0xff]
        %v405 = vld [vmem:[#allocation7 + $0x18] sm:$0xff]
        %v406 = vld [vmem:[#allocation7 + $0x20] sm:$0xff]
        %v407 = vld [vmem:[#allocation7 + $0x28] sm:$0xff]
        %v408 = vld [vmem:[#allocation7 + $0x30] sm:$0xff]
        %v409 = vld [vmem:[#allocation7 + $0x38] sm:$0xff]
        %v410 = vld [vmem:[#allocation7 + $0x40] sm:$0xff]
        %v411 = vld [vmem:[#allocation7 + $0x48] sm:$0xff]
        %v412 = vld [vmem:[#allocation7 + $0x50] sm:$0xff]
        %v413 = vld [vmem:[#allocation7 + $0x58] sm:$0xff]
        %v414 = vld [vmem:[#allocation7 + $0x60] sm:$0xff]
        %v415 = vld [vmem:[#allocation7 + $0x68] sm:$0xff]
        %v416 = vld [vmem:[#allocation7 + $0x70] sm:$0xff]
        %v417 = vld [vmem:[#allocation7 + $0x78] sm:$0xff]
        %v418 = vld [vmem:[%s4] sm:$0x1]
        %v420 = vperm.slane %v418, 0
        %422 = vmatpush.msra.mxu0 %v417
        %423 = vmatpush.msra.mxu0 %v416
        %424 = vmatpush.msra.mxu0 %v415
        %425 = vmatpush.msra.mxu0 %v414
        %426 = vmatpush.msra.mxu0 %v413
        %427 = vmatpush.msra.mxu0 %v412
        %428 = vmatpush.msra.mxu0 %v411
        %429 = vmatpush.msra.mxu0 %v410
        %430 = vmatpush.msra.mxu0 %v409
        %431 = vmatpush.msra.mxu0 %v408
        %432 = vmatpush.msra.mxu0 %v407
        %433 = vmatpush.msra.mxu0 %v406
        %434 = vmatpush.msra.mxu0 %v405
        %435 = vmatpush.msra.mxu0 %v404
        %436 = vmatpush.msra.mxu0 %v403
        %437 = vmatpush.msra.mxu0 %v402
        %438 = vmatmul.f32.gmra.mxu0 %v401
        %v439 = vpop.f32.mrf.mxu0
        %v440 = vadd.f32 %v420, %v439
        %441 = vdwg.mxu0
        %442 = vst [vmem:[%s312] sm:$0xff] %v440
        %s443 = sand.u32 %s168, 1
        %s444 = scalar_lea.sflag [#allocation4], %s443
        %s445 = sand.u32 %s168, 1
        %s446 = smul.addr %s445, 8
        %s447 = scalar_lea.vmem [#allocation8], %s446
        // Predicated region
        $region53: #{tpu_custom_call.1} parent=39 // pred_check
          %p448 = pneg %p178
        $region54: #{tpu_custom_call.1} parent=39 // pred_check_branch
          %450 = sbr.rel (%p448) target = $region56
        $region55: #{tpu_custom_call.1} parent=39 // pred_region
          %452 = vsyncadd %s444, 0
          %s453 = smul.addr %s27, 8
          %s454 = scalar_lea.hbm %s5, %s453
          %s456 = sshll.u32 %s447, 4
          %s457 = int_to_ptr.vmem [resolvable:$true] %s456
          %s458 = sshll.u32 %s454, 4
          %s459 = int_to_ptr.hbm [resolvable:$true] %s458
          %461 = dma.vmem_to_hbm [thread:$0]  %s457, 128, %s459, %s444
        $region56: #{tpu_custom_call.1} parent=39 // pred_fallthru
          _
      $region40: #{tpu_custom_call.1} parent=5 // pred_fallthru
        _
      %p462 = scmp.le.s32.totalorder 2, %s18
      // Predicated region
      $region57: #{tpu_custom_call.1} parent=5 // pred_check
        %p463 = pneg %p462
      $region58: #{tpu_custom_call.1} parent=5 // pred_check_branch
        %465 = sbr.rel (%p463) target = $region60
      $region59: #{tpu_custom_call.1} parent=5 // pred_region
        %s466 = ssub.s32 %s18, 2
        // Predicated region
        $region61: #{tpu_custom_call.1} parent=59 // pred_check
          %p467 = pneg %p184
        $region62: #{tpu_custom_call.1} parent=59 // pred_check_branch
          %469 = sbr.rel (%p467) target = $region64
        $region63: #{tpu_custom_call.1} parent=59 // pred_region
          %s470 = sand.u32 %s169, 1
          %s471 = scalar_lea.sflag [#allocation4], %s470
          %s472 = sand.u32 %s169, 1
          %s473 = smul.addr %s472, 8
          %s474 = scalar_lea.vmem [#allocation8], %s473
          %476 = dma.done %s471, 128
        $region64: #{tpu_custom_call.1} parent=59 // pred_fallthru
          _
      $region60: #{tpu_custom_call.1} parent=5 // pred_fallthru
        _
    $region6: #{tpu_custom_call.1} parent=1 // loop_footer
      %s22 = sadd.s32 1, %s18
    $region7: #{tpu_custom_call.1} parent=1 // loop_footer_branch
      %17 = sbr.rel target = $region3
    $region8: #{tpu_custom_call.1} parent=1 // loop_exit
      _
    %477 = vsyncpa [#allocation3], 1
    %s478 = scalar_lea.sflag [#allocation3], 1
    %479 = vsyncpa %s478, 1
    %480 = vsyncpa [#allocation6], 1
    %481 = vsyncpa [#allocation4], 1
    %s482 = scalar_lea.sflag [#allocation4], 1
    %483 = vsyncpa %s482, 1

</llo_original>
